<compile_context>
chip_gen: v6e
topology: v6e:2x2x1
jax: 0.10.0
libtpu: 0.0.40
codegen_flags: <defaults>
</compile_context>

<pallas_src>
import functools

import jax
import jax.numpy as jnp
from jax import lax
from jax.experimental import pallas as pl
from jax.experimental.pallas import tpu as pltpu


def _dropout_kernel(seed_ref, x_ref, o_ref, *, keep_thresh, inv_keep,
                    block_rows, n_cols):
    # Global flattened element index of every element in this tile
    # (wraps mod 2^32, which is fine for hashing).
    pid = pl.program_id(0)
    rows = lax.broadcasted_iota(jnp.int32, x_ref.shape, 0)
    cols = lax.broadcasted_iota(jnp.int32, x_ref.shape, 1)
    gidx = ((pid * block_rows + rows) * n_cols + cols).astype(jnp.uint32)

    seed = seed_ref[0].astype(jnp.uint32)

    # Stateless per-element hash -> uniform 32-bit words.
    z = gidx * jnp.uint32(0x9E3779B9) + seed * jnp.uint32(0x85EBCA6B) + jnp.uint32(1)
    z = z ^ (z >> 16)
    z = z * jnp.uint32(0x7FEB352D)
    z = z ^ (z >> 15)
    z = z * jnp.uint32(0x846CA68B)
    z = z ^ (z >> 16)

    # keep  <=>  u32 >= floor(p * 2^32)   (drop probability ~= p, as in torch's rand > p)
    keep = z >= jnp.uint32(keep_thresh)

    # Inverted-dropout scaling in f32, single multiply per element.
    scale = jnp.where(keep, jnp.float32(inv_keep), jnp.float32(0.0))
    o_ref[...] = (x_ref[...].astype(jnp.float32) * scale).astype(o_ref.dtype)


def simple_dropout(x, dropout: float, seed: int, training: bool = True,
                   block_bytes: int = 2 * 1024 * 1024):
    """Pallas implementation of the module's dropout forward (single particle)."""
    if (not training) or dropout == 0.0:
        return x  # same early-return as the PyTorch module

    p = float(dropout)
    keep_thresh = min(int(p * 4294967296.0), 4294967295)
    inv_keep = 1.0 / (1.0 - p)

    orig_shape = x.shape
    total = x.size

    # Lane-dense 2-D layout: prefer a last dim that is a multiple of 128.
    n_cols = None
    for c in (1024, 512, 256, 128):
        if total % c == 0:
            n_cols = c
            break
    if n_cols is None:
        n_cols = orig_shape[-1]          # fallback: keep original hidden dim on lanes
    n_rows = total // n_cols
    x2 = x.reshape(n_rows, n_cols)

    # Row tile sized to ~block_bytes; double-buffered (in + out) stays well under
    # scoped VMEM on every generation, including v7x's smaller budget.
    bytes_per_row = n_cols * x2.dtype.itemsize
    target_rows = max(8, block_bytes // max(1, bytes_per_row))
    if n_rows <= target_rows:
        block_rows = n_rows                           # single full-array block
    else:
        block_rows = max(8, (target_rows // 8) * 8)   # keep sublane (8) divisibility

    grid = (pl.cdiv(n_rows, block_rows),)
    seed_arr = jnp.array([seed], dtype=jnp.int32)

    kernel = functools.partial(
        _dropout_kernel,
        keep_thresh=keep_thresh,
        inv_keep=inv_keep,
        block_rows=block_rows,
        n_cols=n_cols,
    )

    out2 = pl.pallas_call(
        kernel,
        out_shape=jax.ShapeDtypeStruct(x2.shape, x2.dtype),
        grid=grid,
        in_specs=[
            pl.BlockSpec(memory_space=pltpu.MemorySpace.SMEM),        # seed scalar
            pl.BlockSpec((block_rows, n_cols), lambda i: (i, 0)),     # x row tile
        ],
        out_specs=pl.BlockSpec((block_rows, n_cols), lambda i: (i, 0)),
        compiler_params=pltpu.CompilerParams(dimension_semantics=("parallel",)),
    )(seed_arr, x2)

    # TODO(synk): in a full ViT block, fuse this dropout as an epilogue on the
    # producing GEMM's output tile instead of a standalone pass to avoid the
    # extra HBM round trip.
    return out2.reshape(orig_shape)


if __name__ == "__main__":
    p = 0.25

    # Case 1: small ViT-like activation (batch=2, seq=8, hidden=32) -> single tile.
    key = jax.random.PRNGKey(0)
    x = jax.random.normal(key, (2, 8, 32), dtype=jnp.float32)
    y = jax.block_until_ready(simple_dropout(x, dropout=p, seed=1234, training=True))
    assert y.shape == x.shape and y.dtype == x.dtype
    kept = y != 0.0
    scaled = x / (1.0 - p)
    assert bool(jnp.all(jnp.where(kept, jnp.abs(y - scaled) < 1e-5, True)))
    drop_frac = 1.0 - float(jnp.mean(kept.astype(jnp.float32)))
    assert 0.05 < drop_frac < 0.60, drop_frac

    # Case 2: force a multi-step grid (small block budget) to exercise pipelining
    # and verify per-tile masks are decorrelated.
    key2 = jax.random.PRNGKey(1)
    x_big = jax.random.normal(key2, (4, 64, 256), dtype=jnp.float32)
    y_big = jax.block_until_ready(
        simple_dropout(x_big, dropout=p, seed=7, training=True, block_bytes=64 * 1024))
    kept_b = y_big != 0.0
    scaled_b = x_big / (1.0 - p)
    assert bool(jnp.all(jnp.where(kept_b, jnp.abs(y_big - scaled_b) < 1e-5, True)))
    kept2d = kept_b.reshape(64, 1024)            # internal (rows, lanes) layout
    tile0, tile1 = kept2d[0:16], kept2d[16:32]   # two different grid tiles
    assert not bool(jnp.all(tile0 == tile1)), "tiles share an identical dropout mask"

    # Eval mode is identity.
    y_eval = jax.block_until_ready(simple_dropout(x, dropout=p, seed=1234, training=False))
    assert bool(jnp.all(y_eval == x))

    print("KERNEL_OK")
</pallas_src>

<mosaic_0001>
module attributes {stable_mosaic.version = 11 : i64} {
  func.func @_dropout_kernel(%arg0: i32, %arg1: memref<1xi32, #tpu.memory_space<smem>>, %arg2: memref<1x512xf32, #tpu.memory_space<vmem>>, %arg3: memref<1x512xf32, #tpu.memory_space<vmem>>) attributes {dimension_semantics = [#tpu.dimension_semantics<parallel>], iteration_bounds = array<i64: 1>, scalar_prefetch = 0 : i64, scratch_operands = 0 : i64, tpu.core_type = #tpu.core_type<tc>, window_params = [{transform_indices = @transform_0, window_bounds = array<i64: 1>}, {transform_indices = @transform_1, window_bounds = array<i64: 1, 512>}, {transform_indices = @transform_2, window_bounds = array<i64: 1, 512>}]} {
    %0 = tpu.iota {dimensions = array<i32: 0>} : vector<1x512xi32>
    %1 = tpu.iota {dimensions = array<i32: 1>} : vector<1x512xi32>
    %c1_i32 = arith.constant 1 : i32
    %2 = arith.muli %arg0, %c1_i32 : i32
    %3 = vector.broadcast %2 : i32 to vector<1x512xi32>
    %4 = arith.addi %3, %0 : vector<1x512xi32>
    %c512_i32 = arith.constant 512 : i32
    %5 = vector.broadcast %c512_i32 : i32 to vector<1x512xi32>
    %6 = arith.muli %4, %5 : vector<1x512xi32>
    %7 = arith.addi %6, %1 : vector<1x512xi32>
    %c0 = arith.constant 0 : index
    %8 = memref.load %arg1[%c0] : memref<1xi32, #tpu.memory_space<smem>>
    %c-1640531527_i32 = arith.constant -1640531527 : i32
    %9 = vector.broadcast %c-1640531527_i32 : i32 to vector<1x512xi32>
    %10 = arith.muli %7, %9 : vector<1x512xi32>
    %c-2048144789_i32 = arith.constant -2048144789 : i32
    %11 = arith.muli %8, %c-2048144789_i32 : i32
    %12 = vector.broadcast %11 : i32 to vector<1x512xi32>
    %13 = arith.addi %10, %12 : vector<1x512xi32>
    %c1_i32_0 = arith.constant 1 : i32
    %14 = vector.broadcast %c1_i32_0 : i32 to vector<1x512xi32>
    %15 = arith.addi %13, %14 : vector<1x512xi32>
    %c16_i32 = arith.constant 16 : i32
    %16 = vector.broadcast %c16_i32 : i32 to vector<1x512xi32>
    %17 = arith.shrui %15, %16 : vector<1x512xi32>
    %18 = arith.xori %15, %17 : vector<1x512xi32>
    %c2146121005_i32 = arith.constant 2146121005 : i32
    %19 = vector.broadcast %c2146121005_i32 : i32 to vector<1x512xi32>
    %20 = arith.muli %18, %19 : vector<1x512xi32>
    %c15_i32 = arith.constant 15 : i32
    %21 = vector.broadcast %c15_i32 : i32 to vector<1x512xi32>
    %22 = arith.shrui %20, %21 : vector<1x512xi32>
    %23 = arith.xori %20, %22 : vector<1x512xi32>
    %c-2073254261_i32 = arith.constant -2073254261 : i32
    %24 = vector.broadcast %c-2073254261_i32 : i32 to vector<1x512xi32>
    %25 = arith.muli %23, %24 : vector<1x512xi32>
    %c16_i32_1 = arith.constant 16 : i32
    %26 = vector.broadcast %c16_i32_1 : i32 to vector<1x512xi32>
    %27 = arith.shrui %25, %26 : vector<1x512xi32>
    %28 = arith.xori %25, %27 : vector<1x512xi32>
    %c1073741824_i32 = arith.constant 1073741824 : i32
    %29 = vector.broadcast %c1073741824_i32 : i32 to vector<1x512xi32>
    %30 = arith.cmpi uge, %28, %29 : vector<1x512xi32>
    %cst = arith.constant 1.33333337 : f32
    %cst_2 = arith.constant 0.000000e+00 : f32
    %31 = vector.broadcast %cst : f32 to vector<1x512xf32>
    %32 = vector.broadcast %cst_2 : f32 to vector<1x512xf32>
    %33 = arith.select %30, %31, %32 : vector<1x512xi1>, vector<1x512xf32>
    %c0_3 = arith.constant 0 : index
    %c0_4 = arith.constant 0 : index
    %34 = vector.load %arg2[%c0_3, %c0_4] : memref<1x512xf32, #tpu.memory_space<vmem>>, vector<1x512xf32>
    %35 = arith.mulf %34, %33 : vector<1x512xf32>
    %c0_5 = arith.constant 0 : index
    %c0_6 = arith.constant 0 : index
    %36 = vector.load %arg3[%c0_5, %c0_6] : memref<1x512xf32, #tpu.memory_space<vmem>>, vector<1x512xf32>
    tpu.vector_store %arg3[%c0_5, %c0_6], %35 {strides = array<i32>} : memref<1x512xf32, #tpu.memory_space<vmem>>, vector<1x512xf32>,
    return
  }
  func.func @transform_0(%arg0: i32) -> i32 {
    %c0_i32 = arith.constant 0 : i32
    %c0_i32_0 = arith.constant 0 : i32
    return %c0_i32 : i32
  }
  func.func @transform_1(%arg0: i32) -> (i32, i32) {
    %c0_i32 = arith.constant 0 : i32
    %c0_i32_0 = arith.constant 0 : i32
    return %arg0, %c0_i32 : i32, i32
  }
  func.func @transform_2(%arg0: i32) -> (i32, i32) {
    %c0_i32 = arith.constant 0 : i32
    %c0_i32_0 = arith.constant 0 : i32
    return %arg0, %c0_i32 : i32, i32
  }
}

</mosaic_0001>

<llo_original>
// kernel: tpu_custom_call.1
$region0: #{tpu_custom_call.1}
  #allocation0 [shape = 'u32[]', space=smem, size = 0x4, offset = 0x4, fixed_abs, tag = 'smem constant byte address 0x4 - core index']
  #allocation1 [shape = 'u32[144,128]{1,0:T(1,128)}', space=vmem, size = 0x12000, scoped, tag = 'internal scratch']
  #allocation2 [shape = 's32[1]{0:T(128)S(6)}', space=smem, size = 0x200, scoped, tag = 'scoped memory for tpu_custom_call.1']
  %s0 = inlined_call_operand.<no memory space> [shape: s32[1], index: 0, kind: input, shape index: {}]
  %s1 = inlined_call_operand.hbm [shape: f32[1,512], index: 1, kind: input, shape index: {}]
  %s2 = inlined_call_operand.hbm [shape: f32[1,512], index: 2, kind: output, shape index: {}]
  %s3 = sld [smem:[#allocation0]]
  $region22: #{tpu_custom_call.1} parent=0
    _
  %s5 = ssub.s32 1, %s3
  %s6 = scalar_select 0, %s5, %s3
  %7 = sst [smem:[#allocation2]] %s0
  $region1: #{tpu_custom_call.1} parent=0
    #allocation3 [shape = 'u8[2048]{0}', space=vmem, size = 0x800, scoped, tag = 'input window, operand 1, single buffered']
    #allocation4 [shape = 's32[1]{0}', space=sflag, size = 0x4, scoped, tag = 'scoped memory for tpu_custom_call.1']
    #allocation5 [shape = 's32[1]{0}', space=sflag, size = 0x4, scoped, tag = 'scoped memory for tpu_custom_call.1']
    #allocation6 [shape = 'u8[2048]{0}', space=vmem, size = 0x800, scoped, tag = 'output window, operand 0, single buffered']
    %8 = vsyncpa [#allocation4], 0
    %9 = vsyncpa [#allocation5], 0
    // Predicated region
    $region2: #{tpu_custom_call.1} parent=1 // pred_check
      _
    $region3: #{tpu_custom_call.1} parent=1 // pred_check_branch
      %11 = sbr.rel (0) target = $region5
    $region4: #{tpu_custom_call.1} parent=1 // pred_region
      _
    $region5: #{tpu_custom_call.1} parent=1 // pred_fallthru
      _
    // Predicated region
    $region6: #{tpu_custom_call.1} parent=1 // pred_check
      _
    $region7: #{tpu_custom_call.1} parent=1 // pred_check_branch
      %13 = sbr.rel (0) target = $region9
    $region8: #{tpu_custom_call.1} parent=1 // pred_region
      %s15 = ssub.s32 64, 64
      %16 = vsyncadd [#allocation4], %s15
      %s18 = sshll.u32 [#allocation3], 4
      %s19 = int_to_ptr.vmem [resolvable:$true] %s18
      %21 = dma.hbm_to_vmem [thread:$0]  %s1, 64, %s19, [#allocation4]
    $region9: #{tpu_custom_call.1} parent=1 // pred_fallthru
      _
    // Predicated region
    $region10: #{tpu_custom_call.1} parent=1 // pred_check
      _
    $region11: #{tpu_custom_call.1} parent=1 // pred_check_branch
      %23 = sbr.rel (0) target = $region13
    $region12: #{tpu_custom_call.1} parent=1 // pred_region
      %24 = dma.done [#allocation4], 64
    $region13: #{tpu_custom_call.1} parent=1 // pred_fallthru
      _
    %v25 = vlaneseq
    %v26 = vshrl.u32 %v25, 7
    %v27 = vlaneseq
    %v28 = vand.u32 %v27, 127
    %v29 = vadd.s32 %v28, 128
    %v30 = vadd.s32 %v28, 256
    %v31 = vadd.s32 %v28, 384
    %v32 = vstv 0
    %v33 = vadd.s32 %v32, %v26
    %v34 = vmul.u32 %v33, 512
    %v35 = vadd.s32 %v34, %v28
    %v36 = vadd.s32 %v34, %v29
    %v37 = vadd.s32 %v34, %v30
    %v38 = vadd.s32 %v34, %v31
    %s39 = sld [smem:[#allocation2]]
    %v40 = vmul.u32 %v35, 2654435769
    %v41 = vmul.u32 %v36, 2654435769
    %v42 = vmul.u32 %v37, 2654435769
    %v43 = vmul.u32 %v38, 2654435769
    %s44 = smul.u32 %s39, 2246822507
    %v45 = vstv %s44
    %v46 = vadd.s32 %v40, %v45
    %v47 = vadd.s32 %v41, %v45
    %v48 = vadd.s32 %v42, %v45
    %v49 = vadd.s32 %v43, %v45
    %v50 = vadd.s32 %v46, 1
    %v51 = vadd.s32 %v47, 1
    %v52 = vadd.s32 %v48, 1
    %v53 = vadd.s32 %v49, 1
    %v54 = vshrl.u32 %v50, 16
    %v55 = vshrl.u32 %v51, 16
    %v56 = vshrl.u32 %v52, 16
    %v57 = vshrl.u32 %v53, 16
    %v58 = vxor.u32 %v50, %v54
    %v59 = vxor.u32 %v51, %v55
    %v60 = vxor.u32 %v52, %v56
    %v61 = vxor.u32 %v53, %v57
    %v62 = vmul.u32 %v58, 2146121005
    %v63 = vmul.u32 %v59, 2146121005
    %v64 = vmul.u32 %v60, 2146121005
    %v65 = vmul.u32 %v61, 2146121005
    %v66 = vshrl.u32 %v62, 15
    %v67 = vshrl.u32 %v63, 15
    %v68 = vshrl.u32 %v64, 15
    %v69 = vshrl.u32 %v65, 15
    %v70 = vxor.u32 %v62, %v66
    %v71 = vxor.u32 %v63, %v67
    %v72 = vxor.u32 %v64, %v68
    %v73 = vxor.u32 %v65, %v69
    %v74 = vmul.u32 %v70, 2221713035
    %v75 = vmul.u32 %v71, 2221713035
    %v76 = vmul.u32 %v72, 2221713035
    %v77 = vmul.u32 %v73, 2221713035
    %v78 = vshrl.u32 %v74, 16
    %v79 = vshrl.u32 %v75, 16
    %v80 = vshrl.u32 %v76, 16
    %v81 = vshrl.u32 %v77, 16
    %v82 = vxor.u32 %v74, %v78
    %v83 = vxor.u32 %v75, %v79
    %v84 = vxor.u32 %v76, %v80
    %v85 = vxor.u32 %v77, %v81
    %vm86 = vcmp.ge.u32.totalorder %v82, 1073741824
    %vm87 = vcmp.ge.u32.totalorder %v83, 1073741824
    %vm88 = vcmp.ge.u32.totalorder %v84, 1073741824
    %vm89 = vcmp.ge.u32.totalorder %v85, 1073741824
    %v90 = vsel %vm86, 1.3333334, 0.0
    %v91 = vsel %vm87, 1.3333334, 0.0
    %v92 = vsel %vm88, 1.3333334, 0.0
    %v93 = vsel %vm89, 1.3333334, 0.0
    %v94 = vld [vmem:[#allocation3] sm:$0xf]
    %v99 = vcombine.low %v90, %v91
    %v100 = vcombine.low %v92, %v93
    %v102 = vunpack.c.l.s4 1966171168
    %v103 = vunpack.c.0.s8 %v102
    %v104 = vlaneseq
    %v105 = vshrl.u32 %v104, 7
    %v106 = vsub.s32 %v103, %v105
    %v107 = vrot.slane %v99, %v106
    %v109 = vunpack.c.l.s4 1966171168
    %v110 = vunpack.c.0.s8 %v109
    %v111 = vlaneseq
    %v112 = vshrl.u32 %v111, 7
    %v113 = vsub.s32 %v110, %v112
    %v114 = vrot.slane %v100, %v113
    %v115 = vcombine.low %v107, %v114
    %v117 = vunpack.c.l.s4 1966171168
    %v118 = vunpack.c.0.s8 %v117
    %v119 = vlaneseq
    %v120 = vshrl.u32 %v119, 7
    %v121 = vsub.s32 %v118, %v120
    %v122 = vrot.slane %v115, %v121
    %v124 = vmul.f32 %v94, %v122
    %v125 = vlaneseq
    %vm126 = vcmp.ge.s32.totalorder %v125, 0
    %vm127 = vcmp.lt.s32.totalorder %v125, 512
    %vm128 = vmand %vm126, %vm127
    %129 = vst.msk [vmem:[#allocation6] sm:$0xf] %vm128, %v124
    // Predicated region
    $region14: #{tpu_custom_call.1} parent=1 // pred_check
      _
    $region15: #{tpu_custom_call.1} parent=1 // pred_check_branch
      %131 = sbr.rel (0) target = $region17
    $region16: #{tpu_custom_call.1} parent=1 // pred_region
      %s133 = ssub.s32 64, 64
      %134 = vsyncadd [#allocation5], %s133
      %s136 = sshll.u32 [#allocation6], 4
      %s137 = int_to_ptr.vmem [resolvable:$true] %s136
      %139 = dma.vmem_to_hbm [thread:$0]  %s137, 64, %s2, [#allocation5]
    $region17: #{tpu_custom_call.1} parent=1 // pred_fallthru
      _
    // Predicated region
    $region18: #{tpu_custom_call.1} parent=1 // pred_check
      _
    $region19: #{tpu_custom_call.1} parent=1 // pred_check_branch
      %141 = sbr.rel (0) target = $region21
    $region20: #{tpu_custom_call.1} parent=1 // pred_region
      %142 = dma.done [#allocation5], 64
    $region21: #{tpu_custom_call.1} parent=1 // pred_fallthru
      _
    %143 = vsyncpa [#allocation4], 1
    %144 = vsyncpa [#allocation5], 1

</llo_original>
